<compile_context>
chip_gen: v7x
topology: tpu7x:2x2x1
jax: 0.10.0
libtpu: 0.0.40
codegen_flags: <defaults>
</compile_context>

<pallas_src>
import functools

import jax
import jax.numpy as jnp
from jax import lax
from jax.experimental import pallas as pl
from jax.experimental.pallas import tpu as pltpu


_LANE = 128
# Streamed block target measured in f32-equivalent bytes (kernels upcast to f32
# in VMEM).  ~2 MiB keeps per-step overhead (~0.35 us) negligible while the full
# working set (double-buffered in/out + ~3 f32 intermediates) stays ~10-15 MiB.
_TARGET_F32_BLOCK_BYTES = 2 * 1024 * 1024
# >= 4 grid steps per v7x TensorCore (2 TCs share the 'parallel' grid axes).
_MIN_GRID_STEPS = 8
# Below this total size, forcing many steps only adds fixed per-step overhead.
_SMALL_INPUT_BYTES = 1 << 20
# vmem_limit_bytes derived from the real block footprint, clamped so it is >=
# the scoped default on every generation (v5e default is 16 MiB) and leaves
# headroom on v7x's 64 MiB physical VMEM.
_VMEM_FLOOR_BYTES = 32 * 1024 * 1024
_VMEM_CAP_BYTES = 40 * 1024 * 1024


def _round_up(x, m):
    return (x + m - 1) // m * m


def _sublane_multiple(dtype):
    """Packed sublane multiple: 8 for f32, 16 for bf16, 32 for int8/fp8."""
    return max(8, 32 // jnp.dtype(dtype).itemsize)


def _clamp_vmem(need_bytes):
    need = int(need_bytes * 1.5) + (2 << 20)          # 50% margin + 2 MiB slack
    return min(max(need, _VMEM_FLOOR_BYTES), _VMEM_CAP_BYTES)


def _vmem_limit_rows(tile_n, lane_width, itemsize, extra_bytes=0):
    padded_lane = _round_up(lane_width, _LANE)
    # double-buffered in + out (native dtype) + ~3 f32 intermediates.
    need = tile_n * padded_lane * (4 * itemsize + 3 * 4) + extra_bytes
    return _clamp_vmem(need)


def _pick_row_tile(n_rows, lane_width, dtype):
    """Rows per block for a (rows, lane_width) streaming kernel."""
    itemsize = jnp.dtype(dtype).itemsize
    sub = _sublane_multiple(dtype)
    # Size off the f32 working set, not the input itemsize.
    t = _TARGET_F32_BLOCK_BYTES // max(1, _round_up(lane_width, _LANE) * 4)
    t = max(sub, min(int(t), 4096))
    t = (t // sub) * sub
    t = max(sub, min(t, _round_up(n_rows, sub)))
    if n_rows * lane_width * itemsize >= _SMALL_INPUT_BYTES:
        # Pipeline depth: >= _MIN_GRID_STEPS steps (>= 4 per v7x core).
        t = min(t, max(sub, _round_up(pl.cdiv(n_rows, _MIN_GRID_STEPS), sub)))
        # Best-effort even step count so both v7x cores get balanced work.
        steps = pl.cdiv(n_rows, t)
        if steps > 1 and steps % 2 == 1:
            t_even = max(sub, _round_up(pl.cdiv(n_rows, steps + 1), sub))
            if pl.cdiv(n_rows, t_even) % 2 == 0:
                t = t_even
    return t


# --------------------------------------------------------------------------- #
# Kernels
# --------------------------------------------------------------------------- #
def _ln_rows_kernel(x_ref, w_ref, b_ref, o_ref, *, eps):
    """LayerNorm over the last (lane) axis of a (tile_n, C) block."""
    x = x_ref[...].astype(jnp.float32)
    mean = jnp.mean(x, axis=-1, keepdims=True)
    xc = x - mean
    var = jnp.mean(xc * xc, axis=-1, keepdims=True)      # biased variance (torch)
    y = xc * lax.rsqrt(var + eps) * w_ref[...] + b_ref[...]
    o_ref[...] = y.astype(o_ref.dtype)
    # NOTE: if profiling ever shows the XLU reduce binding for very wide C,
    # switch the means to an MXU dot with a (C,1) ones/C vector (HBM-bound now).


def _ln_grouped_kernel(x_ref, w_ref, b_ref, a_ref, o_ref, *, eps):
    """Small-C channels_last: G rows of length C packed per 128-lane row.

    Per-segment mean/var computed via a block-diagonal averaging matrix on the
    MXU (no cross-lane relayout, output stays lane-dense)."""
    x = x_ref[...].astype(jnp.float32)                    # (tile_n, G*C)
    a = a_ref[...]                                        # (G*C, G*C) f32
    mean = jnp.dot(x, a, precision=lax.Precision.HIGHEST,
                   preferred_element_type=jnp.float32)
    xc = x - mean
    var = jnp.dot(xc * xc, a, precision=lax.Precision.HIGHEST,
                  preferred_element_type=jnp.float32)
    y = xc * lax.rsqrt(var + eps) * w_ref[...] + b_ref[...]
    o_ref[...] = y.astype(o_ref.dtype)


def _ln_cfirst_kernel(x_ref, w_ref, b_ref, o_ref, *, eps):
    """channels_first: normalize over the channel (sublane) axis of a
    (tile_b, C, tile_s) block; spatial stays on the lane axis (no transpose)."""
    x = x_ref[...].astype(jnp.float32)
    mean = jnp.mean(x, axis=1, keepdims=True)
    xc = x - mean
    var = jnp.mean(xc * xc, axis=1, keepdims=True)
    y = xc * lax.rsqrt(var + eps) * w_ref[...] + b_ref[...]   # w/b are (C, 1)
    o_ref[...] = y.astype(o_ref.dtype)


# --------------------------------------------------------------------------- #
# pallas_call wrappers
# --------------------------------------------------------------------------- #
def _ln_rows_call(x2d, w_row, b_row, eps):
    """LayerNorm over the last axis of (N, C) with C on the lane axis."""
    N, C = x2d.shape
    itemsize = x2d.dtype.itemsize
    tile_n = _pick_row_tile(N, C, x2d.dtype)
    limit = _vmem_limit_rows(tile_n, C, itemsize, extra_bytes=2 * C * 4)
    return pl.pallas_call(
        functools.partial(_ln_rows_kernel, eps=eps),
        out_shape=jax.ShapeDtypeStruct((N, C), x2d.dtype),
        grid_spec=pltpu.PrefetchScalarGridSpec(
            num_scalar_prefetch=0,
            grid=(pl.cdiv(N, tile_n),),
            in_specs=[
                pl.BlockSpec((tile_n, C), lambda i: (i, 0)),
                pl.BlockSpec((1, C), lambda i: (0, 0)),
                pl.BlockSpec((1, C), lambda i: (0, 0)),
            ],
            out_specs=pl.BlockSpec((tile_n, C), lambda i: (i, 0)),
        ),
        compiler_params=pltpu.CompilerParams(
            dimension_semantics=("parallel",),
            vmem_limit_bytes=limit),
    )(x2d, w_row, b_row)


def _ln_grouped_call(xg, wg, bg, avg, eps):
    """Lane-dense grouped kernel on an (ng, 128) packed view."""
    ng, L = xg.shape
    itemsize = xg.dtype.itemsize
    tile_n = _pick_row_tile(ng, L, xg.dtype)
    limit = _vmem_limit_rows(tile_n, L, itemsize,
                             extra_bytes=(L * L + 2 * L) * 4)
    return pl.pallas_call(
        functools.partial(_ln_grouped_kernel, eps=eps),
        out_shape=jax.ShapeDtypeStruct((ng, L), xg.dtype),
        grid_spec=pltpu.PrefetchScalarGridSpec(
            num_scalar_prefetch=0,
            grid=(pl.cdiv(ng, tile_n),),
            in_specs=[
                pl.BlockSpec((tile_n, L), lambda i: (i, 0)),
                pl.BlockSpec((1, L), lambda i: (0, 0)),
                pl.BlockSpec((1, L), lambda i: (0, 0)),
                pl.BlockSpec((L, L), lambda i: (0, 0)),
            ],
            out_specs=pl.BlockSpec((tile_n, L), lambda i: (i, 0)),
        ),
        compiler_params=pltpu.CompilerParams(
            dimension_semantics=("parallel",),
            vmem_limit_bytes=limit),
    )(xg, wg, bg, avg)


def _ln_ref_rows(x2d, w_row, b_row, eps):
    """Plain-JAX LayerNorm for tiny tails (< 128 rows)."""
    x = x2d.astype(jnp.float32)
    u = jnp.mean(x, axis=-1, keepdims=True)
    xc = x - u
    s = jnp.mean(xc * xc, axis=-1, keepdims=True)
    return (xc * lax.rsqrt(s + eps) * w_row + b_row).astype(x2d.dtype)


def _layernorm_cfirst(x, w_col, b_col, eps):
    """channels_first: normalize axis 1 of (B, C, *spatial) without transposing."""
    B, C = x.shape[0], x.shape[1]
    S = 1
    for d in x.shape[2:]:
        S *= d
    x3d = x.reshape(B, C, S)
    itemsize = x3d.dtype.itemsize
    sub = _sublane_multiple(x3d.dtype)
    pad_c_nat = _round_up(C, sub)     # sublane padding of the native-dtype buffers
    pad_c_f32 = _round_up(C, 8)       # sublane padding of the f32 intermediates

    # Size the streamed (padded) f32 block to ~_TARGET_F32_BLOCK_BYTES.
    budget_cells = max(1, _TARGET_F32_BLOCK_BYTES // (pad_c_f32 * 4))
    if S <= budget_cells:
        tile_s = S
        tile_b = max(1, min(B, budget_cells // max(1, S)))
    else:
        tile_s = max(_LANE, (budget_cells // _LANE) * _LANE)
        tile_b = 1

    # Pipeline depth: >= _MIN_GRID_STEPS total steps (>= 4 per v7x TensorCore)
    # when there is enough data for the pipeline to matter.
    if B * C * S * itemsize >= _SMALL_INPUT_BYTES:
        while pl.cdiv(B, tile_b) * pl.cdiv(S, tile_s) < _MIN_GRID_STEPS:
            if tile_b > 1:
                tile_b = max(1, tile_b // 2)
            elif tile_s > _LANE and S > _LANE:
                tile_s = max(_LANE, _round_up(tile_s // 2, _LANE))
            else:
                break

    # VMEM: double-buffered in + out (sublane-padded native dtype) + ~3 f32
    # intermediates (also sublane-padded).
    need = (4 * tile_b * pad_c_nat * tile_s * itemsize
            + 3 * tile_b * pad_c_f32 * tile_s * 4
            + 2 * pad_c_f32 * _LANE * 4)
    limit = _clamp_vmem(need)

    out = pl.pallas_call(
        functools.partial(_ln_cfirst_kernel, eps=eps),
        out_shape=jax.ShapeDtypeStruct((B, C, S), x3d.dtype),
        grid_spec=pltpu.PrefetchScalarGridSpec(
            num_scalar_prefetch=0,
            grid=(pl.cdiv(B, tile_b), pl.cdiv(S, tile_s)),
            in_specs=[
                pl.BlockSpec((tile_b, C, tile_s), lambda i, j: (i, 0, j)),
                pl.BlockSpec((C, 1), lambda i, j: (0, 0)),
                pl.BlockSpec((C, 1), lambda i, j: (0, 0)),
            ],
            out_specs=pl.BlockSpec((tile_b, C, tile_s), lambda i, j: (i, 0, j)),
        ),
        compiler_params=pltpu.CompilerParams(
            dimension_semantics=("parallel", "parallel"),
            vmem_limit_bytes=limit),
    )(x3d, w_col, b_col)
    return out.reshape(x.shape)


# --------------------------------------------------------------------------- #
# Module
# --------------------------------------------------------------------------- #
class MambaLayerNorm:
    """JAX/Pallas port of the PyTorch MambaLayerNorm module (forward only)."""

    def __init__(self, normalized_shape, eps=1e-6, data_format="channels_last",
                 weight=None, bias=None):
        if data_format not in ("channels_last", "channels_first"):
            raise NotImplementedError
        self.eps = float(eps)
        self.data_format = data_format
        self.normalized_shape = (int(normalized_shape),)
        C = self.normalized_shape[0]
        # Parameters stay float32 (like the torch module); never downcast to x.dtype.
        self.weight = (jnp.ones((C,), jnp.float32)
                       if weight is None else jnp.asarray(weight, jnp.float32))
        self.bias = (jnp.zeros((C,), jnp.float32)
                     if bias is None else jnp.asarray(bias, jnp.float32))
        # Hoisted per-call constants (perf-review: build once, not per call).
        self._w_row = self.weight.reshape(1, C)
        self._b_row = self.bias.reshape(1, C)
        self._w_col = self.weight.reshape(C, 1)
        self._b_col = self.bias.reshape(C, 1)
        self._group = None
        if data_format == "channels_last" and C < _LANE and _LANE % C == 0:
            G = _LANE // C
            idx = jnp.arange(_LANE)
            avg = (idx[:, None] // C == idx[None, :] // C).astype(jnp.float32) / C
            self._group = (G,
                           jnp.tile(self._w_row, (1, G)),
                           jnp.tile(self._b_row, (1, G)),
                           avg)

    def __call__(self, x):
        C = self.normalized_shape[0]
        if self.data_format == "channels_last":
            lead = x.shape[:-1]
            x2d = x.reshape(-1, C)
            N = x2d.shape[0]
            if self._group is not None:
                G, wg, bg, avg = self._group
                n_main = (N // G) * G
                if n_main == N:
                    out = _ln_grouped_call(x2d.reshape(N // G, G * C),
                                           wg, bg, avg, self.eps)
                    return out.reshape(*lead, C)
                if n_main > 0:
                    # Lane-dense kernel on the bulk, plain JAX on the tiny tail.
                    main = _ln_grouped_call(
                        x2d[:n_main].reshape(n_main // G, G * C),
                        wg, bg, avg, self.eps).reshape(n_main, C)
                    tail = _ln_ref_rows(x2d[n_main:], self._w_row, self._b_row,
                                        self.eps)
                    return jnp.concatenate([main, tail], axis=0).reshape(*lead, C)
                # N < G: too small for the grouped path; fall through.
            out = _ln_rows_call(x2d, self._w_row, self._b_row, self.eps)
            return out.reshape(*lead, C)
        # channels_first: reduce over axis 1 directly (no HBM-level transposes).
        return _layernorm_cfirst(x, self._w_col, self._b_col, self.eps)


# --------------------------------------------------------------------------- #
# References & self-test
# --------------------------------------------------------------------------- #
def _ref_channels_last(x, w, b, eps):
    x = x.astype(jnp.float32)
    u = x.mean(axis=-1, keepdims=True)
    s = ((x - u) ** 2).mean(axis=-1, keepdims=True)
    return (x - u) / jnp.sqrt(s + eps) * w + b


def _ref_channels_first(x, w, b, eps):
    x = x.astype(jnp.float32)
    u = x.mean(axis=1, keepdims=True)
    s = ((x - u) ** 2).mean(axis=1, keepdims=True)
    xn = (x - u) / jnp.sqrt(s + eps)
    return w[:, None, None, None] * xn + b[:, None, None, None]


if __name__ == "__main__":
    key = jax.random.PRNGKey(0)
    k1, k2, k3, k4, k5, k6, k7 = jax.random.split(key, 7)
    eps = 1e-6

    # ---- channels_first: 5D input (B, C, D, H, W), sublane-reduction kernel ----
    C_cf = 4
    x_cf = jax.random.normal(k1, (2, C_cf, 8, 8, 8), dtype=jnp.float32)
    w_cf = 1.0 + 0.1 * jax.random.normal(k2, (C_cf,), dtype=jnp.float32)
    b_cf = 0.1 * jax.random.normal(k3, (C_cf,), dtype=jnp.float32)
    ln_cf = MambaLayerNorm(C_cf, eps=eps, data_format="channels_first",
                           weight=w_cf, bias=b_cf)
    y_cf = jax.block_until_ready(ln_cf(x_cf))
    ref_cf = _ref_channels_first(x_cf, w_cf, b_cf, eps)
    assert y_cf.shape == x_cf.shape
    assert jnp.allclose(y_cf, ref_cf, atol=1e-5, rtol=1e-5)

    # ---- channels_first, bigger spatial: exercises multi-step pipeline split ----
    x_cfb = jax.random.normal(k7, (2, C_cf, 32, 32, 32), dtype=jnp.float32)
    y_cfb = jax.block_until_ready(ln_cf(x_cfb))
    ref_cfb = _ref_channels_first(x_cfb, w_cf, b_cf, eps)
    assert y_cfb.shape == x_cfb.shape
    assert jnp.allclose(y_cfb, ref_cfb, atol=1e-5, rtol=1e-5)

    # ---- channels_last, small C: (B, H, W, C) with C=32 -> grouped lane-dense ----
    C_cl = 32
    x_cl = jax.random.normal(k4, (2, 8, 8, C_cl), dtype=jnp.float32)
    w_cl = 1.0 + 0.1 * jax.random.normal(k2, (C_cl,), dtype=jnp.float32)
    b_cl = 0.1 * jax.random.normal(k3, (C_cl,), dtype=jnp.float32)
    ln_cl = MambaLayerNorm(C_cl, eps=eps, data_format="channels_last",
                           weight=w_cl, bias=b_cl)
    y_cl = jax.block_until_ready(ln_cl(x_cl))
    ref_cl = _ref_channels_last(x_cl, w_cl, b_cl, eps)
    assert y_cl.shape == x_cl.shape
    assert jnp.allclose(y_cl, ref_cl, atol=1e-5, rtol=1e-5)

    # ---- channels_last, small C with N % G != 0: grouped bulk + JAX tail ----
    x_tl = jax.random.normal(k5, (1, 3, 5, C_cl), dtype=jnp.float32)   # N=15, G=4
    y_tl = jax.block_until_ready(ln_cl(x_tl))
    ref_tl = _ref_channels_last(x_tl, w_cl, b_cl, eps)
    assert y_tl.shape == x_tl.shape
    assert jnp.allclose(y_tl, ref_tl, atol=1e-5, rtol=1e-5)

    # ---- channels_last, wide C (not a divisor of 128): plain row kernel ----
    C_w = 160
    x_w = jax.random.normal(k6, (2, 3, C_w), dtype=jnp.float32)
    w_w = 1.0 + 0.1 * jax.random.normal(k2, (C_w,), dtype=jnp.float32)
    b_w = 0.1 * jax.random.normal(k3, (C_w,), dtype=jnp.float32)
    ln_w = MambaLayerNorm(C_w, eps=eps, data_format="channels_last",
                          weight=w_w, bias=b_w)
    y_w = jax.block_until_ready(ln_w(x_w))
    ref_w = _ref_channels_last(x_w, w_w, b_w, eps)
    assert y_w.shape == x_w.shape
    assert jnp.allclose(y_w, ref_w, atol=1e-5, rtol=1e-5)

    # ---- channels_last, bf16 input, C >= 128: dtype-aware sublane tiling ----
    C_bf = 256
    x_bf = jax.random.normal(k5, (2, 5, 7, C_bf), dtype=jnp.float32).astype(jnp.bfloat16)
    w_bf = 1.0 + 0.1 * jax.random.normal(k2, (C_bf,), dtype=jnp.float32)
    b_bf = 0.1 * jax.random.normal(k3, (C_bf,), dtype=jnp.float32)
    ln_bf = MambaLayerNorm(C_bf, eps=eps, data_format="channels_last",
                           weight=w_bf, bias=b_bf)
    y_bf = jax.block_until_ready(ln_bf(x_bf))
    ref_bf = _ref_channels_last(x_bf, w_bf, b_bf, eps)
    assert y_bf.shape == x_bf.shape
    assert jnp.allclose(y_bf.astype(jnp.float32), ref_bf, atol=5e-2, rtol=5e-2)

    print("KERNEL_OK")
</pallas_src>

<mosaic_0001>
module attributes {stable_mosaic.version = 11 : i64} {
  func.func @_ln_cfirst_kernel(%arg0: i32, %arg1: i32, %arg2: memref<2x4x512xf32, #tpu.memory_space<vmem>>, %arg3: memref<4x1xf32, #tpu.memory_space<vmem>>, %arg4: memref<4x1xf32, #tpu.memory_space<vmem>>, %arg5: memref<2x4x512xf32, #tpu.memory_space<vmem>>) attributes {dimension_semantics = [#tpu.dimension_semantics<parallel>, #tpu.dimension_semantics<parallel>], iteration_bounds = array<i64: 1, 1>, scalar_prefetch = 0 : i64, scratch_operands = 0 : i64, tpu.core_type = #tpu.core_type<tc>, window_params = [{transform_indices = @transform_0, window_bounds = array<i64: 2, 4, 512>}, {pipeline_mode = #tpu.pipeline_mode<synchronous>, transform_indices = @transform_1, window_bounds = array<i64: 4, 1>}, {pipeline_mode = #tpu.pipeline_mode<synchronous>, transform_indices = @transform_2, window_bounds = array<i64: 4, 1>}, {transform_indices = @transform_3, window_bounds = array<i64: 2, 4, 512>}]} {
    %c0 = arith.constant 0 : index
    %c0_0 = arith.constant 0 : index
    %c0_1 = arith.constant 0 : index
    %0 = vector.load %arg2[%c0, %c0_0, %c0_1] : memref<2x4x512xf32, #tpu.memory_space<vmem>>, vector<2x4x512xf32>
    %cst = arith.constant dense<0.000000e+00> : vector<2x512xf32>
    %1 = vector.multi_reduction <add>, %0, %cst [1] : vector<2x4x512xf32> to vector<2x512xf32>
    %2 = vector.shape_cast %1 : vector<2x512xf32> to vector<2x1x512xf32>
    %cst_2 = arith.constant 4.000000e+00 : f32
    %3 = vector.broadcast %cst_2 : f32 to vector<2x1x512xf32>
    %4 = arith.divf %2, %3 : vector<2x1x512xf32>
    %5 = vector.broadcast %4 : vector<2x1x512xf32> to vector<2x4x512xf32>
    %6 = arith.subf %0, %5 : vector<2x4x512xf32>
    %7 = arith.mulf %6, %6 : vector<2x4x512xf32>
    %cst_3 = arith.constant dense<0.000000e+00> : vector<2x512xf32>
    %8 = vector.multi_reduction <add>, %7, %cst_3 [1] : vector<2x4x512xf32> to vector<2x512xf32>
    %9 = vector.shape_cast %8 : vector<2x512xf32> to vector<2x1x512xf32>
    %cst_4 = arith.constant 4.000000e+00 : f32
    %10 = vector.broadcast %cst_4 : f32 to vector<2x1x512xf32>
    %11 = arith.divf %9, %10 : vector<2x1x512xf32>
    %cst_5 = arith.constant 9.99999997E-7 : f32
    %12 = vector.broadcast %cst_5 : f32 to vector<2x1x512xf32>
    %13 = arith.addf %11, %12 : vector<2x1x512xf32>
    %14 = math.rsqrt %13 : vector<2x1x512xf32>
    %15 = vector.broadcast %14 : vector<2x1x512xf32> to vector<2x4x512xf32>
    %16 = arith.mulf %6, %15 : vector<2x4x512xf32>
    %c0_6 = arith.constant 0 : index
    %c0_7 = arith.constant 0 : index
    %17 = vector.load %arg3[%c0_6, %c0_7] : memref<4x1xf32, #tpu.memory_space<vmem>>, vector<4x1xf32>
    %18 = vector.shape_cast %17 : vector<4x1xf32> to vector<1x4x1xf32>
    %19 = vector.broadcast %18 : vector<1x4x1xf32> to vector<2x4x512xf32>
    %20 = arith.mulf %16, %19 : vector<2x4x512xf32>
    %c0_8 = arith.constant 0 : index
    %c0_9 = arith.constant 0 : index
    %21 = vector.load %arg4[%c0_8, %c0_9] : memref<4x1xf32, #tpu.memory_space<vmem>>, vector<4x1xf32>
    %22 = vector.shape_cast %21 : vector<4x1xf32> to vector<1x4x1xf32>
    %23 = vector.broadcast %22 : vector<1x4x1xf32> to vector<2x4x512xf32>
    %24 = arith.addf %20, %23 : vector<2x4x512xf32>
    %c0_10 = arith.constant 0 : index
    %c0_11 = arith.constant 0 : index
    %c0_12 = arith.constant 0 : index
    %25 = vector.load %arg5[%c0_10, %c0_11, %c0_12] : memref<2x4x512xf32, #tpu.memory_space<vmem>>, vector<2x4x512xf32>
    tpu.vector_store %arg5[%c0_10, %c0_11, %c0_12], %24 {strides = array<i32>} : memref<2x4x512xf32, #tpu.memory_space<vmem>>, vector<2x4x512xf32>,
    return
  }
  func.func @transform_0(%arg0: i32, %arg1: i32) -> (i32, i32, i32) {
    %c0_i32 = arith.constant 0 : i32
    %c0_i32_0 = arith.constant 0 : i32
    return %arg0, %c0_i32, %arg1 : i32, i32, i32
  }
  func.func @transform_1(%arg0: i32, %arg1: i32) -> (i32, i32) {
    %c0_i32 = arith.constant 0 : i32
    %c0_i32_0 = arith.constant 0 : i32
    %c0_i32_1 = arith.constant 0 : i32
    return %c0_i32, %c0_i32_0 : i32, i32
  }
  func.func @transform_2(%arg0: i32, %arg1: i32) -> (i32, i32) {
    %c0_i32 = arith.constant 0 : i32
    %c0_i32_0 = arith.constant 0 : i32
    %c0_i32_1 = arith.constant 0 : i32
    return %c0_i32, %c0_i32_0 : i32, i32
  }
  func.func @transform_3(%arg0: i32, %arg1: i32) -> (i32, i32, i32) {
    %c0_i32 = arith.constant 0 : i32
    %c0_i32_0 = arith.constant 0 : i32
    return %arg0, %c0_i32, %arg1 : i32, i32, i32
  }
}

</mosaic_0001>

<llo_original>
// kernel: tpu_custom_call.1
$region0: #{tpu_custom_call.1}
  #allocation0 [shape = 'u32[]', space=smem, size = 0x4, offset = 0x4, fixed_abs, tag = 'smem constant byte address 0x4 - core index']
  #allocation1 [shape = 'u32[144,128]{1,0:T(1,128)}', space=vmem, size = 0x12000, scoped, tag = 'internal scratch']
  %s0 = inlined_call_operand.hbm [shape: f32[2,4,512], index: 0, kind: input, shape index: {}]
  %s1 = inlined_call_operand.vmem [shape: f32[4,1], index: 1, kind: input, shape index: {}]
  %s2 = inlined_call_operand.vmem [shape: f32[4,1], index: 2, kind: input, shape index: {}]
  %s3 = inlined_call_operand.hbm [shape: f32[2,4,512], index: 3, kind: output, shape index: {}]
  %s4 = sld [smem:[#allocation0]]
  $region26: #{tpu_custom_call.1} parent=0
    _
  %s6 = ssub.s32 1, %s4
  %s7 = scalar_select 0, %s6, %s4
  $region1: #{tpu_custom_call.1} parent=0
    #allocation2 [shape = 'u8[16384]{0}', space=vmem, size = 0x4000, scoped, tag = 'input window, operand 0, single buffered']
    #allocation3 [shape = 's32[1]{0}', space=sflag, size = 0x4, scoped, tag = 'scoped memory for tpu_custom_call.1']
    #allocation4 [shape = 's32[1]{0}', space=sflag, size = 0x4, scoped, tag = 'scoped memory for tpu_custom_call.1']
    #allocation5 [shape = 'u8[16384]{0}', space=vmem, size = 0x4000, scoped, tag = 'output window, operand 0, single buffered']
    %8 = vsyncpa [#allocation3], 0
    %9 = vsyncpa [#allocation4], 0
    // Predicated region
    $region2: #{tpu_custom_call.1} parent=1 // pred_check
      _
    $region3: #{tpu_custom_call.1} parent=1 // pred_check_branch
      %11 = sbr.rel (0) target = $region5
    $region4: #{tpu_custom_call.1} parent=1 // pred_region
      %s13 = ssub.s32 512, 512
      %14 = vsyncadd [#allocation3], %s13
      %s15 = sshll.u32 [#allocation2], 4
      %s16 = int_to_ptr.vmem [resolvable:$true] %s15
      %21 = dma.hbm_to_vmem [thread:$0]  %s0, 512, %s16, [#allocation3], 256, 256, 16
    $region5: #{tpu_custom_call.1} parent=1 // pred_fallthru
      _
    // Predicated region
    $region6: #{tpu_custom_call.1} parent=1 // pred_check
      _
    $region7: #{tpu_custom_call.1} parent=1 // pred_check_branch
      %23 = sbr.rel (0) target = $region9
    $region8: #{tpu_custom_call.1} parent=1 // pred_region
      _
    $region9: #{tpu_custom_call.1} parent=1 // pred_fallthru
      _
    // Predicated region
    $region10: #{tpu_custom_call.1} parent=1 // pred_check
      _
    $region11: #{tpu_custom_call.1} parent=1 // pred_check_branch
      %25 = sbr.rel (0) target = $region13
    $region12: #{tpu_custom_call.1} parent=1 // pred_region
      _
    $region13: #{tpu_custom_call.1} parent=1 // pred_fallthru
      _
    // Predicated region
    $region14: #{tpu_custom_call.1} parent=1 // pred_check
      _
    $region15: #{tpu_custom_call.1} parent=1 // pred_check_branch
      %27 = sbr.rel (0) target = $region17
    $region16: #{tpu_custom_call.1} parent=1 // pred_region
      %28 = dma.done [#allocation3], 512
    $region17: #{tpu_custom_call.1} parent=1 // pred_fallthru
      _
    %v29 = vld [vmem:[#allocation2] sm:$0xff]
    %v30 = vld [vmem:[#allocation2 + $0x8] sm:$0xff]
    %v31 = vld [vmem:[#allocation2 + $0x10] sm:$0xff]
    %v32 = vld [vmem:[#allocation2 + $0x18] sm:$0xff]
    %v37 = vcombine.high %v29, %v29
    %v38 = vcombine.high %v30, %v30
    %v39 = vcombine.high %v31, %v31
    %v40 = vcombine.high %v32, %v32
    %vm45 = vcmask 1043456
    %v46 = vsel %vm45, %v29, 0.0
    %v47 = vrot.slane %v46, 4
    %v48 = vadd.f32 %v46, %v47
    %v49 = vrot.slane %v48, 2
    %v50 = vadd.f32 %v48, %v49
    %v51 = vrot.slane %v50, 1
    %v52 = vadd.f32 %v50, %v51
    %v53 = vsel %vm45, %v37, 0.0
    %v54 = vrot.slane %v53, 4
    %v55 = vadd.f32 %v53, %v54
    %v56 = vrot.slane %v55, 2
    %v57 = vadd.f32 %v55, %v56
    %v58 = vrot.slane %v57, 1
    %v59 = vadd.f32 %v57, %v58
    %v60 = vsel %vm45, %v30, 0.0
    %v61 = vrot.slane %v60, 4
    %v62 = vadd.f32 %v60, %v61
    %v63 = vrot.slane %v62, 2
    %v64 = vadd.f32 %v62, %v63
    %v65 = vrot.slane %v64, 1
    %v66 = vadd.f32 %v64, %v65
    %v67 = vsel %vm45, %v38, 0.0
    %v68 = vrot.slane %v67, 4
    %v69 = vadd.f32 %v67, %v68
    %v70 = vrot.slane %v69, 2
    %v71 = vadd.f32 %v69, %v70
    %v72 = vrot.slane %v71, 1
    %v73 = vadd.f32 %v71, %v72
    %v74 = vsel %vm45, %v31, 0.0
    %v75 = vrot.slane %v74, 4
    %v76 = vadd.f32 %v74, %v75
    %v77 = vrot.slane %v76, 2
    %v78 = vadd.f32 %v76, %v77
    %v79 = vrot.slane %v78, 1
    %v80 = vadd.f32 %v78, %v79
    %v81 = vsel %vm45, %v39, 0.0
    %v82 = vrot.slane %v81, 4
    %v83 = vadd.f32 %v81, %v82
    %v84 = vrot.slane %v83, 2
    %v85 = vadd.f32 %v83, %v84
    %v86 = vrot.slane %v85, 1
    %v87 = vadd.f32 %v85, %v86
    %v88 = vsel %vm45, %v32, 0.0
    %v89 = vrot.slane %v88, 4
    %v90 = vadd.f32 %v88, %v89
    %v91 = vrot.slane %v90, 2
    %v92 = vadd.f32 %v90, %v91
    %v93 = vrot.slane %v92, 1
    %v94 = vadd.f32 %v92, %v93
    %v95 = vsel %vm45, %v40, 0.0
    %v96 = vrot.slane %v95, 4
    %v97 = vadd.f32 %v95, %v96
    %v98 = vrot.slane %v97, 2
    %v99 = vadd.f32 %v97, %v98
    %v100 = vrot.slane %v99, 1
    %v101 = vadd.f32 %v99, %v100
    %v102 = vrcp.pop 4.0
    %v103 = vmul.f32 %v52, %v102
    %v104 = vmul.f32 %v59, %v102
    %v105 = vmul.f32 %v66, %v102
    %v106 = vmul.f32 %v73, %v102
    %v107 = vmul.f32 %v80, %v102
    %v108 = vmul.f32 %v87, %v102
    %v109 = vmul.f32 %v94, %v102
    %v110 = vmul.f32 %v101, %v102
    %v119 = vcombine.low %v103, %v104
    %v120 = vcombine.low %v105, %v106
    %v121 = vcombine.low %v107, %v108
    %v122 = vcombine.low %v109, %v110
    %v127 = vsub.f32 %v29, %v119
    %v128 = vsub.f32 %v30, %v120
    %v129 = vsub.f32 %v31, %v121
    %v130 = vsub.f32 %v32, %v122
    %v131 = vmul.f32 %v127, %v127
    %v132 = vmul.f32 %v128, %v128
    %v133 = vmul.f32 %v129, %v129
    %v134 = vmul.f32 %v130, %v130
    %v139 = vcombine.high %v131, %v131
    %v140 = vcombine.high %v132, %v132
    %v141 = vcombine.high %v133, %v133
    %v142 = vcombine.high %v134, %v134
    %v147 = vsel %vm45, %v131, 0.0
    %v148 = vrot.slane %v147, 4
    %v149 = vadd.f32 %v147, %v148
    %v150 = vrot.slane %v149, 2
    %v151 = vadd.f32 %v149, %v150
    %v152 = vrot.slane %v151, 1
    %v153 = vadd.f32 %v151, %v152
    %v154 = vsel %vm45, %v139, 0.0
    %v155 = vrot.slane %v154, 4
    %v156 = vadd.f32 %v154, %v155
    %v157 = vrot.slane %v156, 2
    %v158 = vadd.f32 %v156, %v157
    %v159 = vrot.slane %v158, 1
    %v160 = vadd.f32 %v158, %v159
    %v161 = vsel %vm45, %v132, 0.0
    %v162 = vrot.slane %v161, 4
    %v163 = vadd.f32 %v161, %v162
    %v164 = vrot.slane %v163, 2
    %v165 = vadd.f32 %v163, %v164
    %v166 = vrot.slane %v165, 1
    %v167 = vadd.f32 %v165, %v166
    %v168 = vsel %vm45, %v140, 0.0
    %v169 = vrot.slane %v168, 4
    %v170 = vadd.f32 %v168, %v169
    %v171 = vrot.slane %v170, 2
    %v172 = vadd.f32 %v170, %v171
    %v173 = vrot.slane %v172, 1
    %v174 = vadd.f32 %v172, %v173
    %v175 = vsel %vm45, %v133, 0.0
    %v176 = vrot.slane %v175, 4
    %v177 = vadd.f32 %v175, %v176
    %v178 = vrot.slane %v177, 2
    %v179 = vadd.f32 %v177, %v178
    %v180 = vrot.slane %v179, 1
    %v181 = vadd.f32 %v179, %v180
    %v182 = vsel %vm45, %v141, 0.0
    %v183 = vrot.slane %v182, 4
    %v184 = vadd.f32 %v182, %v183
    %v185 = vrot.slane %v184, 2
    %v186 = vadd.f32 %v184, %v185
    %v187 = vrot.slane %v186, 1
    %v188 = vadd.f32 %v186, %v187
    %v189 = vsel %vm45, %v134, 0.0
    %v190 = vrot.slane %v189, 4
    %v191 = vadd.f32 %v189, %v190
    %v192 = vrot.slane %v191, 2
    %v193 = vadd.f32 %v191, %v192
    %v194 = vrot.slane %v193, 1
    %v195 = vadd.f32 %v193, %v194
    %v196 = vsel %vm45, %v142, 0.0
    %v197 = vrot.slane %v196, 4
    %v198 = vadd.f32 %v196, %v197
    %v199 = vrot.slane %v198, 2
    %v200 = vadd.f32 %v198, %v199
    %v201 = vrot.slane %v200, 1
    %v202 = vadd.f32 %v200, %v201
    %v203 = vmul.f32 %v153, %v102
    %v204 = vmul.f32 %v160, %v102
    %v205 = vmul.f32 %v167, %v102
    %v206 = vmul.f32 %v174, %v102
    %v207 = vmul.f32 %v181, %v102
    %v208 = vmul.f32 %v188, %v102
    %v209 = vmul.f32 %v195, %v102
    %v210 = vmul.f32 %v202, %v102
    %v211 = vadd.f32 %v203, 1e-06
    %v212 = vadd.f32 %v204, 1e-06
    %v213 = vadd.f32 %v205, 1e-06
    %v214 = vadd.f32 %v206, 1e-06
    %v215 = vadd.f32 %v207, 1e-06
    %v216 = vadd.f32 %v208, 1e-06
    %v217 = vadd.f32 %v209, 1e-06
    %v218 = vadd.f32 %v210, 1e-06
    %v219 = vrsqrt.pop %v211
    %v220 = vrsqrt.pop %v212
    %v221 = vrsqrt.pop %v213
    %v222 = vrsqrt.pop %v214
    %v223 = vrsqrt.pop %v215
    %v224 = vrsqrt.pop %v216
    %v225 = vrsqrt.pop %v217
    %v226 = vrsqrt.pop %v218
    %v235 = vcombine.low %v219, %v220
    %v236 = vcombine.low %v221, %v222
    %v237 = vcombine.low %v223, %v224
    %v238 = vcombine.low %v225, %v226
    %v243 = vmul.f32 %v127, %v235
    %v244 = vmul.f32 %v128, %v236
    %v245 = vmul.f32 %v129, %v237
    %v246 = vmul.f32 %v130, %v238
    %v247 = vld [vmem:[%s1] sm:$0xf]
    %249 = vset.pattern.permute.xlu0 0
    %250 = vperm.xlu0 %249, %v247
    %v251 = vpop.permute.xlu0 %250
    %v253 = vunpack.c.l.s4 839922192
    %v254 = vunpack.c.0.s8 %v253
    %v255 = vlaneseq
    %v256 = vshrl.u32 %v255, 7
    %v257 = vsub.s32 %v254, %v256
    %v258 = vrot.slane %v251, %v257
    %v260 = vmul.f32 %v243, %v258
    %v261 = vmul.f32 %v244, %v258
    %v262 = vmul.f32 %v245, %v258
    %v263 = vmul.f32 %v246, %v258
    %v264 = vld [vmem:[%s2] sm:$0xf]
    %266 = vset.pattern.permute.xlu0 0
    %267 = vperm.xlu0 %266, %v264
    %v268 = vpop.permute.xlu0 %267
    %v270 = vunpack.c.l.s4 839922192
    %v271 = vunpack.c.0.s8 %v270
    %v272 = vlaneseq
    %v273 = vshrl.u32 %v272, 7
    %v274 = vsub.s32 %v271, %v273
    %v275 = vrot.slane %v268, %v274
    %v277 = vadd.f32 %v260, %v275
    %v278 = vadd.f32 %v261, %v275
    %v279 = vadd.f32 %v262, %v275
    %v280 = vadd.f32 %v263, %v275
    %281 = vst [vmem:[#allocation5] sm:$0xff] %v277
    %282 = vst [vmem:[#allocation5 + $0x8] sm:$0xff] %v278
    %283 = vst [vmem:[#allocation5 + $0x10] sm:$0xff] %v279
    %284 = vst [vmem:[#allocation5 + $0x18] sm:$0xff] %v280
    // Predicated region
    $region18: #{tpu_custom_call.1} parent=1 // pred_check
      _
    $region19: #{tpu_custom_call.1} parent=1 // pred_check_branch
      %286 = sbr.rel (0) target = $region21
    $region20: #{tpu_custom_call.1} parent=1 // pred_region
      %s288 = ssub.s32 512, 512
      %289 = vsyncadd [#allocation4], %s288
      %s290 = sshll.u32 [#allocation5], 4
      %s291 = int_to_ptr.vmem [resolvable:$true] %s290
      %296 = dma.vmem_to_hbm [thread:$0]  %s291, 512, %s3, [#allocation4], 256, 256, 16
    $region21: #{tpu_custom_call.1} parent=1 // pred_fallthru
      _
    // Predicated region
    $region22: #{tpu_custom_call.1} parent=1 // pred_check
      _
    $region23: #{tpu_custom_call.1} parent=1 // pred_check_branch
      %298 = sbr.rel (0) target = $region25
    $region24: #{tpu_custom_call.1} parent=1 // pred_region
      %299 = dma.done [#allocation4], 512
    $region25: #{tpu_custom_call.1} parent=1 // pred_fallthru
      _
    %300 = vsyncpa [#allocation3], 1
    %301 = vsyncpa [#allocation4], 1

</llo_original>
